<compile_context>
chip_gen: v7x
topology: tpu7x:2x2x1
jax: 0.10.0
libtpu: 0.0.40
codegen_flags: <defaults>
</compile_context>

<pallas_src>
import jax
import jax.numpy as jnp
from jax import lax
from jax.experimental import pallas as pl
from jax.experimental.pallas import tpu as pltpu

_LOG_CLAMP = -100.0               # PyTorch nn.BCELoss clamps each log term at -100
_MAX_LANES = 512                  # lane width of each row tile (multiple of 128)
_SLAB_ROWS = 256                  # rows per in-kernel slab (strip-mining granule)
_BLOCK_BYTES = 4 * 1024 * 1024    # ~4 MiB of input per operand per block
_VMEM_LIMIT = 48 * 1024 * 1024    # v5e default is 16 MiB; v7x physical is 64 MiB


def _cdiv(a, b):
    return -(-a // b)


def _num_tensorcores():
    """2 on v7x-class chips (2 TCs/chip), else 1.  Best-effort device_kind probe."""
    try:
        kind = jax.devices()[0].device_kind.lower()
    except Exception:  # no TPU visible / interpret mode
        return 1
    return 2 if ("v7" in kind or "7x" in kind) else 1


def _log_likelihood(p, t, hard_labels):
    """Per-element log-likelihood ll such that BCE loss = -ll (nn.BCELoss clamping)."""
    if hard_labels:
        # Single log per element (halves EUP pressure); valid only for t in {0, 1}.
        q = jnp.where(t >= 0.5, p, 1.0 - p)
        return jnp.maximum(jnp.log(q), _LOG_CLAMP)
    log_p = jnp.maximum(jnp.log(p), _LOG_CLAMP)
    log_1mp = jnp.maximum(jnp.log(1.0 - p), _LOG_CLAMP)
    # == t*log_p + (1-t)*log_1mp, rewritten with 2 fewer VPU ops per element.
    return t * (log_p - log_1mp) + log_1mp


def _bce_ll_partials(pred2, target2, *, rows, lanes, tile_r, slab_r,
                     n_par, blocks_per_core, hard_labels):
    """Partial sums of per-element log-likelihood over a (rows, lanes) layout.

    Returns an (n_par*8, lanes) f32 array; the single cross-lane reduce happens
    once in the wrapper.
    """
    grid_rows_total = _cdiv(rows, tile_r)
    last_blk = grid_rows_total - 1
    n_slabs = tile_r // slab_r
    ragged = (n_par * blocks_per_core * tile_r) != rows   # any block overruns `rows`?

    def in_map(p, j):
        blk = p * blocks_per_core + j
        # Clamp fully-out-of-range blocks (odd 2-core splits); they are masked to 0.
        return (jnp.minimum(blk, last_blk), 0)

    def kernel(pred_ref, target_ref, out_ref):
        p_idx = pl.program_id(0)
        j = pl.program_id(1)
        blk = p_idx * blocks_per_core + j            # logical (unclamped) block index

        @pl.when(j == 0)
        def _init():
            out_ref[...] = jnp.zeros_like(out_ref)

        def slab_sum(s, masked):
            r0 = s * slab_r                          # static slice start (zero cost)
            p = pred_ref[pl.ds(r0, slab_r), :].astype(jnp.float32)
            t = target_ref[pl.ds(r0, slab_r), :].astype(jnp.float32)
            ll = _log_likelihood(p, t, hard_labels)
            if masked:
                rid = blk * tile_r + r0 + lax.broadcasted_iota(jnp.int32, ll.shape, 0)
                ll = jnp.where(rid < rows, ll, 0.0)  # select, so garbage/NaN is dropped
            # Fold the slab into (8, lanes) with pure VPU vreg adds (no XLU reduce).
            return jnp.sum(ll.reshape(-1, 8, lanes), axis=0)

        def accumulate(masked):
            acc = jnp.zeros((8, lanes), jnp.float32)
            for s in range(n_slabs):                 # static unroll; acc chains live ranges
                acc = acc + slab_sum(s, masked)
            out_ref[...] += acc

        if not ragged:
            accumulate(False)                        # fast path: no masking anywhere
        else:
            overruns = (blk + 1) * tile_r > rows     # only mask blocks that overrun

            @pl.when(jnp.logical_not(overruns))
            def _full():
                accumulate(False)

            @pl.when(overruns)
            def _masked():
                accumulate(True)

    n_elem = rows * lanes
    cost = pl.CostEstimate(
        flops=8 * n_elem,
        transcendentals=(1 if hard_labels else 2) * n_elem,
        bytes_accessed=(pred2.size * pred2.dtype.itemsize
                        + target2.size * target2.dtype.itemsize
                        + n_par * 8 * lanes * 4),
    )

    if n_par == 2:
        # Shard the leading axis across v7x's two TensorCores.
        dim_sems = (pltpu.CORE_PARALLEL, pltpu.ARBITRARY)
    else:
        dim_sems = ("arbitrary", "arbitrary")

    return pl.pallas_call(
        kernel,
        out_shape=jax.ShapeDtypeStruct((n_par * 8, lanes), jnp.float32),
        grid_spec=pltpu.PrefetchScalarGridSpec(
            num_scalar_prefetch=0,
            grid=(n_par, blocks_per_core),
            in_specs=[
                pl.BlockSpec((tile_r, lanes), in_map),
                pl.BlockSpec((tile_r, lanes), in_map),
            ],
            out_specs=pl.BlockSpec((8, lanes), lambda p, j: (p, 0)),
        ),
        compiler_params=pltpu.CompilerParams(
            dimension_semantics=dim_sems,
            vmem_limit_bytes=_VMEM_LIMIT,
        ),
        cost_estimate=cost,
    )(pred2, target2)


def bce_loss(pred, target, *, hard_labels=False, block_bytes=_BLOCK_BYTES):
    """Mean binary cross-entropy over all elements (matches nn.BCELoss()).

    hard_labels=True enables a single-log-per-element fast path that is only
    valid when every target is exactly 0 or 1 (leave False for soft targets).
    """
    n = pred.size
    assert target.size == n and n > 0

    flat_p = pred.reshape(-1)
    flat_t = target.reshape(-1)

    # Shrink the lane width for small inputs so the kernel still sees >= 8 rows.
    lanes = _MAX_LANES
    while lanes > 128 and n < 8 * lanes:
        lanes //= 2

    rows = ((n // lanes) // 8) * 8        # kernel handles a multiple-of-8 row count
    n_main = rows * lanes                 # leftover (< 8*lanes elems) goes to the jnp tail

    total_ll = jnp.zeros((), jnp.float32)

    if rows >= 8:
        # Zero-copy reshape when n is divisible; otherwise a small prefix slice.
        main_p = flat_p if n_main == n else flat_p[:n_main]
        main_t = flat_t if n_main == n else flat_t[:n_main]
        pred2 = main_p.reshape(rows, lanes)
        target2 = main_t.reshape(rows, lanes)

        # Dtype-aware block sizing: ~block_bytes of input per operand per block.
        itemsize = max(pred2.dtype.itemsize, target2.dtype.itemsize)
        tile_r = block_bytes // (lanes * itemsize)
        tile_r = max(8, (tile_r // 8) * 8)
        tile_r = min(tile_r, rows)
        if tile_r >= _SLAB_ROWS:
            slab_r = _SLAB_ROWS
            tile_r = (tile_r // slab_r) * slab_r
        else:
            slab_r = tile_r

        grid_rows_total = _cdiv(rows, tile_r)
        n_par = 2 if (_num_tensorcores() >= 2 and grid_rows_total >= 2) else 1
        blocks_per_core = _cdiv(grid_rows_total, n_par)

        partials = _bce_ll_partials(
            pred2, target2, rows=rows, lanes=lanes, tile_r=tile_r, slab_r=slab_r,
            n_par=n_par, blocks_per_core=blocks_per_core, hard_labels=hard_labels)
        total_ll = total_ll + jnp.sum(partials)       # single cross-lane reduce

    if n_main < n:
        tail_p = flat_p[n_main:].astype(jnp.float32)
        tail_t = flat_t[n_main:].astype(jnp.float32)
        total_ll = total_ll + jnp.sum(_log_likelihood(tail_p, tail_t, hard_labels))

    # TODO(synk): for N >~ 1e8 elements per lane slot, switch to pairwise/compensated
    # accumulation to bound f32 rounding error.
    return (-total_ll / n).astype(jnp.float32)


def _reference_bce(pred, target):
    p = pred.reshape(-1).astype(jnp.float32)
    t = target.reshape(-1).astype(jnp.float32)
    return jnp.mean(
        -(t * jnp.maximum(jnp.log(p), _LOG_CLAMP)
          + (1.0 - t) * jnp.maximum(jnp.log(1.0 - p), _LOG_CLAMP))
    )


if __name__ == "__main__":
    key = jax.random.PRNGKey(0)
    keys = jax.random.split(key, 8)

    # --- main case (matches the module spec shapes) -------------------------
    B, C, H, W = 2, 4, 16, 16
    pred = jax.nn.sigmoid(jax.random.normal(keys[0], (B, C, H, W), dtype=jnp.float32))
    target = jax.random.bernoulli(keys[1], 0.5, (B, C, H, W)).astype(jnp.float32)
    loss = bce_loss(pred, target)
    jax.block_until_ready(loss)
    ref = _reference_bce(pred, target)
    assert jnp.allclose(loss, ref, rtol=1e-5, atol=1e-6), (loss, ref)

    # --- native bf16 inputs (no wrapper-side cast; kernel casts on the tile) -
    loss_bf = bce_loss(pred.astype(jnp.bfloat16), target.astype(jnp.bfloat16))
    jax.block_until_ready(loss_bf)
    ref_bf = _reference_bce(pred.astype(jnp.bfloat16), target.astype(jnp.bfloat16))
    assert jnp.allclose(loss_bf, ref_bf, rtol=1e-4, atol=1e-5), (loss_bf, ref_bf)

    # --- multi-block accumulation + soft targets (small blocks force >1 step) -
    pred_m = jax.nn.sigmoid(jax.random.normal(keys[2], (2, 4, 64, 64), jnp.float32))
    target_m = jax.random.uniform(keys[3], (2, 4, 64, 64), dtype=jnp.float32)
    loss_m = bce_loss(pred_m, target_m, block_bytes=64 * 1024)
    jax.block_until_ready(loss_m)
    ref_m = _reference_bce(pred_m, target_m)
    assert jnp.allclose(loss_m, ref_m, rtol=1e-5, atol=1e-6), (loss_m, ref_m)

    # --- ragged last block (in-kernel masking) + hard-label single-log path ---
    pred_r = jax.nn.sigmoid(jax.random.normal(keys[4], (2, 3, 64, 64), jnp.float32))
    target_r = jax.random.bernoulli(keys[5], 0.5, (2, 3, 64, 64)).astype(jnp.float32)
    loss_r = bce_loss(pred_r, target_r, block_bytes=64 * 1024, hard_labels=True)
    jax.block_until_ready(loss_r)
    ref_r = _reference_bce(pred_r, target_r)
    assert jnp.allclose(loss_r, ref_r, rtol=1e-5, atol=1e-6), (loss_r, ref_r)

    # --- odd, non-lane-divisible shape (tiny jnp tail path) -------------------
    pred_o = jax.nn.sigmoid(jax.random.normal(keys[6], (2, 3, 7, 5), jnp.float32))
    target_o = jax.random.bernoulli(keys[7], 0.5, (2, 3, 7, 5)).astype(jnp.float32)
    loss_o = bce_loss(pred_o, target_o)
    jax.block_until_ready(loss_o)
    ref_o = _reference_bce(pred_o, target_o)
    assert jnp.allclose(loss_o, ref_o, rtol=1e-5, atol=1e-6), (loss_o, ref_o)

    print("KERNEL_OK")
</pallas_src>

<mosaic_0001>
module attributes {stable_mosaic.version = 11 : i64} {
  func.func @kernel(%arg0: i32, %arg1: i32, %arg2: memref<8x256xf32, #tpu.memory_space<vmem>>, %arg3: memref<8x256xf32, #tpu.memory_space<vmem>>, %arg4: memref<8x256xf32, #tpu.memory_space<vmem>>) attributes {dimension_semantics = [#tpu.dimension_semantics<arbitrary>, #tpu.dimension_semantics<arbitrary>], iteration_bounds = array<i64: 1, 1>, scalar_prefetch = 0 : i64, scratch_operands = 0 : i64, tpu.core_type = #tpu.core_type<tc>, window_params = [{transform_indices = @transform_0, window_bounds = array<i64: 8, 256>}, {transform_indices = @transform_1, window_bounds = array<i64: 8, 256>}, {transform_indices = @transform_2, window_bounds = array<i64: 8, 256>}]} {
    %c0_i32 = arith.constant 0 : i32
    %0 = arith.cmpi eq, %arg1, %c0_i32 : i32
    %1 = arith.extui %0 : i1 to i32
    %c0_i32_0 = arith.constant 0 : i32
    %2 = arith.cmpi ne, %1, %c0_i32_0 : i32
    scf.if %2 {
      %cst_12 = arith.constant 0.000000e+00 : f32
      %23 = vector.broadcast %cst_12 : f32 to vector<8x256xf32>
      %c0_13 = arith.constant 0 : index
      %c0_14 = arith.constant 0 : index
      %24 = vector.load %arg4[%c0_13, %c0_14] : memref<8x256xf32, #tpu.memory_space<vmem>>, vector<8x256xf32>
      tpu.vector_store %arg4[%c0_13, %c0_14], %23 {strides = array<i32>} : memref<8x256xf32, #tpu.memory_space<vmem>>, vector<8x256xf32>,
    } else {
    }
    %cst = arith.constant 0.000000e+00 : f32
    %3 = vector.broadcast %cst : f32 to vector<8x256xf32>
    %c0 = arith.constant 0 : index
    %c0_1 = arith.constant 0 : index
    %4 = vector.load %arg2[%c0, %c0_1] : memref<8x256xf32, #tpu.memory_space<vmem>>, vector<8x256xf32>
    %c0_2 = arith.constant 0 : index
    %c0_3 = arith.constant 0 : index
    %5 = vector.load %arg3[%c0_2, %c0_3] : memref<8x256xf32, #tpu.memory_space<vmem>>, vector<8x256xf32>
    %6 = math.log %4 : vector<8x256xf32>
    %cst_4 = arith.constant -1.000000e+02 : f32
    %7 = vector.broadcast %cst_4 : f32 to vector<8x256xf32>
    %8 = arith.maximumf %6, %7 : vector<8x256xf32>
    %cst_5 = arith.constant 1.000000e+00 : f32
    %9 = vector.broadcast %cst_5 : f32 to vector<8x256xf32>
    %10 = arith.subf %9, %4 : vector<8x256xf32>
    %11 = math.log %10 : vector<8x256xf32>
    %cst_6 = arith.constant -1.000000e+02 : f32
    %12 = vector.broadcast %cst_6 : f32 to vector<8x256xf32>
    %13 = arith.maximumf %11, %12 : vector<8x256xf32>
    %14 = arith.subf %8, %13 : vector<8x256xf32>
    %15 = arith.mulf %5, %14 : vector<8x256xf32>
    %16 = arith.addf %15, %13 : vector<8x256xf32>
    %17 = vector.shape_cast %16 : vector<8x256xf32> to vector<1x8x256xf32>
    %cst_7 = arith.constant dense<0.000000e+00> : vector<8x256xf32>
    %18 = vector.multi_reduction <add>, %17, %cst_7 [0] : vector<1x8x256xf32> to vector<8x256xf32>
    %19 = arith.addf %3, %18 : vector<8x256xf32>
    %c0_8 = arith.constant 0 : index
    %c0_9 = arith.constant 0 : index
    %20 = vector.load %arg4[%c0_8, %c0_9] : memref<8x256xf32, #tpu.memory_space<vmem>>, vector<8x256xf32>
    %21 = arith.addf %20, %19 : vector<8x256xf32>
    %c0_10 = arith.constant 0 : index
    %c0_11 = arith.constant 0 : index
    %22 = vector.load %arg4[%c0_10, %c0_11] : memref<8x256xf32, #tpu.memory_space<vmem>>, vector<8x256xf32>
    tpu.vector_store %arg4[%c0_10, %c0_11], %21 {strides = array<i32>} : memref<8x256xf32, #tpu.memory_space<vmem>>, vector<8x256xf32>,
    return
  }
  func.func @transform_0(%arg0: i32, %arg1: i32) -> (i32, i32) {
    %c1_i32 = arith.constant 1 : i32
    %0 = arith.muli %arg0, %c1_i32 : i32
    %1 = arith.addi %0, %arg1 : i32
    %c0_i32 = arith.constant 0 : i32
    %2 = arith.minsi %1, %c0_i32 : i32
    %c0_i32_0 = arith.constant 0 : i32
    %c0_i32_1 = arith.constant 0 : i32
    return %2, %c0_i32_0 : i32, i32
  }
  func.func @transform_1(%arg0: i32, %arg1: i32) -> (i32, i32) {
    %c1_i32 = arith.constant 1 : i32
    %0 = arith.muli %arg0, %c1_i32 : i32
    %1 = arith.addi %0, %arg1 : i32
    %c0_i32 = arith.constant 0 : i32
    %2 = arith.minsi %1, %c0_i32 : i32
    %c0_i32_0 = arith.constant 0 : i32
    %c0_i32_1 = arith.constant 0 : i32
    return %2, %c0_i32_0 : i32, i32
  }
  func.func @transform_2(%arg0: i32, %arg1: i32) -> (i32, i32) {
    %c0_i32 = arith.constant 0 : i32
    %c0_i32_0 = arith.constant 0 : i32
    return %arg0, %c0_i32 : i32, i32
  }
}

</mosaic_0001>

<llo_original>
// kernel: tpu_custom_call.1
$region0: #{tpu_custom_call.1}
  #allocation0 [shape = 'u32[]', space=smem, size = 0x4, offset = 0x4, fixed_abs, tag = 'smem constant byte address 0x4 - core index']
  #allocation1 [shape = 'u32[144,128]{1,0:T(1,128)}', space=vmem, size = 0x12000, scoped, tag = 'internal scratch']
  %s0 = inlined_call_operand.hbm [shape: f32[8,256], index: 0, kind: input, shape index: {}]
  %s1 = inlined_call_operand.hbm [shape: f32[8,256], index: 1, kind: input, shape index: {}]
  %s2 = inlined_call_operand.hbm [shape: f32[8,256], index: 2, kind: output, shape index: {}]
  %s3 = sld [smem:[#allocation0]]
  $region30: #{tpu_custom_call.1} parent=0
    _
  %s5 = ssub.s32 1, %s3
  %s6 = scalar_select 0, %s5, %s3
  $region1: #{tpu_custom_call.1} parent=0
    #allocation2 [shape = 'u8[8192]{0}', space=vmem, size = 0x2000, scoped, tag = 'input window, operand 0, single buffered']
    #allocation3 [shape = 's32[1]{0}', space=sflag, size = 0x4, scoped, tag = 'scoped memory for tpu_custom_call.1']
    #allocation4 [shape = 's32[1]{0}', space=sflag, size = 0x4, scoped, tag = 'scoped memory for tpu_custom_call.1']
    #allocation5 [shape = 'u8[8192]{0}', space=vmem, size = 0x2000, scoped, tag = 'input window, operand 1, single buffered']
    #allocation6 [shape = 's32[1]{0}', space=sflag, size = 0x4, scoped, tag = 'scoped memory for tpu_custom_call.1']
    #allocation7 [shape = 'u8[8192]{0}', space=vmem, size = 0x2000, scoped, tag = 'output window, operand 0, single buffered']
    %7 = vsyncpa [#allocation3], 0
    %8 = vsyncpa [#allocation6], 0
    %9 = vsyncpa [#allocation4], 0
    // Predicated region
    $region2: #{tpu_custom_call.1} parent=1 // pred_check
      _
    $region3: #{tpu_custom_call.1} parent=1 // pred_check_branch
      %11 = sbr.rel (0) target = $region5
    $region4: #{tpu_custom_call.1} parent=1 // pred_region
      %s12 = sadd.s32 0, 0
      %p13 = scmp.lt.s32.totalorder %s12, 0
      %s14 = scalar_select %p13, %s12, 0
      %s16 = ssub.s32 256, 256
      %17 = vsyncadd [#allocation3], %s16
      %s18 = smul.addr %s14, 2
      %s19 = smul.addr %s18, 128
      %s20 = scalar_lea.hbm %s0, %s19
      %s22 = sshll.u32 [#allocation2], 4
      %s23 = int_to_ptr.vmem [resolvable:$true] %s22
      %25 = dma.hbm_to_vmem [thread:$0]  %s20, 256, %s23, [#allocation3]
    $region5: #{tpu_custom_call.1} parent=1 // pred_fallthru
      _
    // Predicated region
    $region6: #{tpu_custom_call.1} parent=1 // pred_check
      _
    $region7: #{tpu_custom_call.1} parent=1 // pred_check_branch
      %27 = sbr.rel (0) target = $region9
    $region8: #{tpu_custom_call.1} parent=1 // pred_region
      %s28 = sadd.s32 0, 0
      %p29 = scmp.lt.s32.totalorder %s28, 0
      %s30 = scalar_select %p29, %s28, 0
      %s32 = ssub.s32 256, 256
      %33 = vsyncadd [#allocation6], %s32
      %s34 = smul.addr %s30, 2
      %s35 = smul.addr %s34, 128
      %s36 = scalar_lea.hbm %s1, %s35
      %s38 = sshll.u32 [#allocation5], 4
      %s39 = int_to_ptr.vmem [resolvable:$true] %s38
      %41 = dma.hbm_to_vmem [thread:$0]  %s36, 256, %s39, [#allocation6]
    $region9: #{tpu_custom_call.1} parent=1 // pred_fallthru
      _
    // Predicated region
    $region10: #{tpu_custom_call.1} parent=1 // pred_check
      _
    $region11: #{tpu_custom_call.1} parent=1 // pred_check_branch
      %43 = sbr.rel (0) target = $region13
    $region12: #{tpu_custom_call.1} parent=1 // pred_region
      %44 = dma.done [#allocation3], 256
    $region13: #{tpu_custom_call.1} parent=1 // pred_fallthru
      _
    // Predicated region
    $region14: #{tpu_custom_call.1} parent=1 // pred_check
      _
    $region15: #{tpu_custom_call.1} parent=1 // pred_check_branch
      %46 = sbr.rel (0) target = $region17
    $region16: #{tpu_custom_call.1} parent=1 // pred_region
      %47 = dma.done [#allocation6], 256
    $region17: #{tpu_custom_call.1} parent=1 // pred_fallthru
      _
    %s48 = sadd.s32 0, 0
    %p49 = scmp.lt.s32.totalorder %s48, 0
    %s50 = scalar_select %p49, %s48, 0
    %s51 = sadd.s32 0, 0
    %p52 = scmp.lt.s32.totalorder %s51, 0
    %s53 = scalar_select %p52, %s51, 0
    %p54 = scmp.eq.s32.totalorder 0, 0
    // Predicated region
    $region18: #{tpu_custom_call.1} parent=1 // pred_check
      %p55 = pneg %p54
    $region19: #{tpu_custom_call.1} parent=1 // pred_check_branch
      %57 = sbr.rel (%p55) target = $region21
    $region20: #{tpu_custom_call.1} parent=1 // pred_region
      %58 = vst [vmem:[#allocation7] sm:$0xff] 0.0
      %59 = vst [vmem:[#allocation7 + $0x8] sm:$0xff] 0.0
    $region21: #{tpu_custom_call.1} parent=1 // pred_fallthru
      _
    %v60 = vld [vmem:[#allocation2] sm:$0xff]
    %v61 = vld [vmem:[#allocation2 + $0x8] sm:$0xff]
    %v62 = vld [vmem:[#allocation5] sm:$0xff]
    %v63 = vld [vmem:[#allocation5 + $0x8] sm:$0xff]
    %v64 = vlog2.pop %v60
    %v65 = vmul.f32 %v64, 0.6931472
    %v66 = vlog2.pop %v61
    %v67 = vmul.f32 %v66, 0.6931472
    %v68 = vmax.f32 %v65, -100.0
    %v69 = vmax.f32 %v67, -100.0
    %v70 = vsub.f32 1.0, %v60
    %v71 = vsub.f32 1.0, %v61
    %v72 = vlog2.pop %v70
    %v73 = vmul.f32 %v72, 0.6931472
    %v74 = vlog2.pop %v71
    %v75 = vmul.f32 %v74, 0.6931472
    %v76 = vmax.f32 %v73, -100.0
    %v77 = vmax.f32 %v75, -100.0
    %v78 = vsub.f32 %v68, %v76
    %v79 = vsub.f32 %v69, %v77
    %v80 = vmul.f32 %v62, %v78
    %v81 = vmul.f32 %v63, %v79
    %v82 = vadd.f32 %v80, %v76
    %v83 = vadd.f32 %v81, %v77
    %v84 = vadd.f32 %v82, 0.0
    %v85 = vadd.f32 %v83, 0.0
    %v86 = vadd.f32 %v84, 0.0
    %v87 = vadd.f32 %v85, 0.0
    %v88 = vld [vmem:[#allocation7] sm:$0xff]
    %v89 = vld [vmem:[#allocation7 + $0x8] sm:$0xff]
    %v90 = vadd.f32 %v88, %v86
    %v91 = vadd.f32 %v89, %v87
    %92 = vst [vmem:[#allocation7] sm:$0xff] %v90
    %93 = vst [vmem:[#allocation7 + $0x8] sm:$0xff] %v91
    // Predicated region
    $region22: #{tpu_custom_call.1} parent=1 // pred_check
      _
    $region23: #{tpu_custom_call.1} parent=1 // pred_check_branch
      %95 = sbr.rel (0) target = $region25
    $region24: #{tpu_custom_call.1} parent=1 // pred_region
      %s97 = ssub.s32 256, 256
      %98 = vsyncadd [#allocation4], %s97
      %s100 = sshll.u32 [#allocation7], 4
      %s101 = int_to_ptr.vmem [resolvable:$true] %s100
      %103 = dma.vmem_to_hbm [thread:$0]  %s101, 256, %s2, [#allocation4]
    $region25: #{tpu_custom_call.1} parent=1 // pred_fallthru
      _
    // Predicated region
    $region26: #{tpu_custom_call.1} parent=1 // pred_check
      _
    $region27: #{tpu_custom_call.1} parent=1 // pred_check_branch
      %105 = sbr.rel (0) target = $region29
    $region28: #{tpu_custom_call.1} parent=1 // pred_region
      %106 = dma.done [#allocation4], 256
    $region29: #{tpu_custom_call.1} parent=1 // pred_fallthru
      _
    %107 = vsyncpa [#allocation3], 1
    %108 = vsyncpa [#allocation6], 1
    %109 = vsyncpa [#allocation4], 1

</llo_original>
